<compile_context>
chip_gen: v6e
topology: v6e:2x2x1
jax: 0.10.0
libtpu: 0.0.40
codegen_flags: <defaults>
</compile_context>

<pallas_src>
import math

import jax
import jax.numpy as jnp
from jax.experimental import pallas as pl
from jax.experimental.pallas import tpu as pltpu


def _node_apply_kernel(h_ref, w_ref, b_ref, o_ref):
    # h_ref: (tile_rows, pack*dim_in)   w_ref: (pack*dim_in, pack*dim_out)
    # b_ref: (1, pack*dim_out)          o_ref: (tile_rows, pack*dim_out)
    acc = jnp.dot(h_ref[...], w_ref[...], preferred_element_type=jnp.float32)
    o_ref[...] = (acc + b_ref[...]).astype(o_ref.dtype)


def _round_up(x, m):
    return ((x + m - 1) // m) * m


def _pick_pack(dim_out, max_pack=8):
    """Smallest row-pack factor making the output last dim a multiple of 128
    lanes (unmasked stores)."""
    if dim_out % 128 == 0:
        return 1
    pack = 128 // math.gcd(dim_out, 128)
    if pack > max_pack:
        # TODO(synk): odd dim_out (e.g. 7) would need pack=128; fall back to
        # masked partial stores rather than a huge block-diagonal weight.
        return 1
    return pack


def _device_tuning():
    """(double-buffered tile byte budget, number of TensorCores per chip)."""
    kind = ""
    try:
        kind = jax.devices()[0].device_kind.lower()
    except Exception:
        pass
    if "v7" in kind:
        return 24 << 20, 2   # 64 MiB physical / 32 MiB scoped VMEM, 2 TCs
    if "v6" in kind:
        return 24 << 20, 1   # 128 MiB physical / 32 MiB scoped VMEM, 1 TC
    # v5e or unknown: conservative (16 MiB default scoped VMEM), 1 TC
    return 12 << 20, 1


def make_node_apply(weight, bias, *, compute_dtype=None, out_dtype=None,
                    max_pack=8):
    """One-time layer init.  weight: (dim_out, dim_in) [PyTorch layout];
    bias: (dim_out,).  Returns forward(h: (N, dim_in)) -> (N, dim_out)."""
    dim_out, dim_in = weight.shape
    assert bias.shape == (dim_out,)

    pack = _pick_pack(dim_out, max_pack)
    din_p = dim_in * pack
    dout_p = dim_out * pack

    # ---- one-time parameter packing (hoisted out of the hot path) --------
    w_t = weight.T                                               # (dim_in, dim_out)
    w_packed = jnp.kron(jnp.eye(pack, dtype=w_t.dtype), w_t)     # block-diag
    b_packed = jnp.tile(bias, pack).reshape(1, dout_p)           # f32 bias on f32 acc
    if compute_dtype is not None:
        w_packed = w_packed.astype(compute_dtype)

    budget_bytes, num_tc = _device_tuning()

    def forward(h):
        N, di = h.shape
        assert di == dim_in
        odt = out_dtype if out_dtype is not None else h.dtype
        hc = h if compute_dtype is None else h.astype(compute_dtype)

        # Pad N up to a multiple of `pack` (keeps the 128-lane-dense output;
        # costs at most pack-1 zero rows of extra DMA), slice back at the end.
        pad = (-N) % pack
        if pad:
            hc = jnp.pad(hc, ((0, pad), (0, 0)))
        n_rows = (N + pad) // pack
        h_packed = hc.reshape(n_rows, din_p)      # free row-major reshape

        in_isz = jnp.dtype(hc.dtype).itemsize
        out_isz = jnp.dtype(odt).itemsize
        # Sublane packing: f32 -> 8 rows/vreg, bf16 -> 16, int8/fp8 -> 32.
        align = {4: 8, 2: 16, 1: 32}.get(in_isz, 8)

        # Largest tile that fits the double-buffered VMEM byte budget.
        bytes_per_row = din_p * in_isz + dout_p * out_isz
        budget_rows = max(align,
                          (budget_bytes // (2 * bytes_per_row)) // align * align)
        if num_tc >= 2 and n_rows >= 2 * align:
            # >=2 grid steps so the "parallel" axis shards across both TCs.
            target = _round_up(pl.cdiv(n_rows, num_tc), align)
        else:
            target = _round_up(n_rows, align)
        tile_rows = max(align, min(budget_rows, target))
        grid = (pl.cdiv(n_rows, tile_rows),)

        out_packed = pl.pallas_call(
            _node_apply_kernel,
            out_shape=jax.ShapeDtypeStruct((n_rows, dout_p), odt),
            grid_spec=pltpu.PrefetchScalarGridSpec(
                num_scalar_prefetch=0,
                grid=grid,
                in_specs=[
                    pl.BlockSpec((tile_rows, din_p), lambda i: (i, 0)),
                    # Constant block indices: fetched once, not re-DMA'd.
                    pl.BlockSpec((din_p, dout_p), lambda i: (0, 0)),
                    pl.BlockSpec((1, dout_p), lambda i: (0, 0)),
                ],
                out_specs=pl.BlockSpec((tile_rows, dout_p), lambda i: (i, 0)),
            ),
            compiler_params=pltpu.CompilerParams(
                dimension_semantics=("parallel",),
            ),
        )(h_packed, w_packed, b_packed)

        out = out_packed.reshape(n_rows * pack, dim_out)
        if pad:
            out = out[:N]
        return out

    return forward


def node_apply(h, weight, bias, **kwargs):
    """Convenience one-shot wrapper (packs params per call; prefer
    make_node_apply in a real model so packing happens once at layer init)."""
    return make_node_apply(weight, bias, **kwargs)(h)


if __name__ == "__main__":
    key = jax.random.PRNGKey(0)
    k_h, k_w, k_b = jax.random.split(key, 3)

    num_nodes = 1001     # non-multiple of pack (=2) -> exercises the pad path
    dim_in = 32
    dim_out = 64

    # node.data['h']
    h = jax.random.normal(k_h, (num_nodes, dim_in), dtype=jnp.float32)
    # nn.Linear(dim_in, dim_out) parameters, deterministic init
    bound = 1.0 / (dim_in ** 0.5)
    weight = jax.random.uniform(k_w, (dim_out, dim_in), dtype=jnp.float32,
                                minval=-bound, maxval=bound)
    bias = jax.random.uniform(k_b, (dim_out,), dtype=jnp.float32,
                              minval=-bound, maxval=bound)

    # Layer init (one-time packing), then forward.
    apply_fn = make_node_apply(weight, bias)
    out = apply_fn(h)
    out = jax.block_until_ready(out)

    # reference check against plain JAX (matches nn.Linear forward; both use
    # the same default TPU matmul precision)
    ref = h @ weight.T + bias
    assert out.shape == (num_nodes, dim_out)
    assert jnp.allclose(out, ref, atol=1e-4, rtol=1e-4), (
        float(jnp.max(jnp.abs(out - ref))))

    print("KERNEL_OK")
</pallas_src>

<mosaic_0001>
module attributes {stable_mosaic.version = 11 : i64} {
  func.func @_node_apply_kernel(%arg0: i32, %arg1: memref<504x64xf32, #tpu.memory_space<vmem>>, %arg2: memref<64x128xf32, #tpu.memory_space<vmem>>, %arg3: memref<1x128xf32, #tpu.memory_space<vmem>>, %arg4: memref<504x128xf32, #tpu.memory_space<vmem>>) attributes {dimension_semantics = [#tpu.dimension_semantics<parallel>], iteration_bounds = array<i64: 1>, scalar_prefetch = 0 : i64, scratch_operands = 0 : i64, tpu.core_type = #tpu.core_type<tc>, window_params = [{transform_indices = @transform_0, window_bounds = array<i64: 504, 64>}, {pipeline_mode = #tpu.pipeline_mode<synchronous>, transform_indices = @transform_1, window_bounds = array<i64: 64, 128>}, {pipeline_mode = #tpu.pipeline_mode<synchronous>, transform_indices = @transform_2, window_bounds = array<i64: 1, 128>}, {transform_indices = @transform_3, window_bounds = array<i64: 504, 128>}]} {
    %c0 = arith.constant 0 : index
    %c0_0 = arith.constant 0 : index
    %0 = vector.load %arg1[%c0, %c0_0] : memref<504x64xf32, #tpu.memory_space<vmem>>, vector<504x64xf32>
    %c0_1 = arith.constant 0 : index
    %c0_2 = arith.constant 0 : index
    %1 = vector.load %arg2[%c0_1, %c0_2] : memref<64x128xf32, #tpu.memory_space<vmem>>, vector<64x128xf32>
    %cst = arith.constant dense<0.000000e+00> : vector<504x128xf32>
    %2 = tpu.matmul %0, %1, %cst {dimension_numbers = #tpu.dot_dimension_numbers<[1], [0], [0], [1], [0, 0, 1, 1], [], []>} : vector<504x64xf32>, vector<64x128xf32>, vector<504x128xf32> -> vector<504x128xf32>
    %c0_3 = arith.constant 0 : index
    %c0_4 = arith.constant 0 : index
    %3 = vector.load %arg3[%c0_3, %c0_4] : memref<1x128xf32, #tpu.memory_space<vmem>>, vector<1x128xf32>
    %4 = vector.broadcast %3 : vector<1x128xf32> to vector<504x128xf32>
    %5 = arith.addf %2, %4 : vector<504x128xf32>
    %c0_5 = arith.constant 0 : index
    %c0_6 = arith.constant 0 : index
    %6 = vector.load %arg4[%c0_5, %c0_6] : memref<504x128xf32, #tpu.memory_space<vmem>>, vector<504x128xf32>
    tpu.vector_store %arg4[%c0_5, %c0_6], %5 {strides = array<i32>} : memref<504x128xf32, #tpu.memory_space<vmem>>, vector<504x128xf32>,
    return
  }
  func.func @transform_0(%arg0: i32) -> (i32, i32) {
    %c0_i32 = arith.constant 0 : i32
    %c0_i32_0 = arith.constant 0 : i32
    return %arg0, %c0_i32 : i32, i32
  }
  func.func @transform_1(%arg0: i32) -> (i32, i32) {
    %c0_i32 = arith.constant 0 : i32
    %c0_i32_0 = arith.constant 0 : i32
    %c0_i32_1 = arith.constant 0 : i32
    return %c0_i32, %c0_i32_0 : i32, i32
  }
  func.func @transform_2(%arg0: i32) -> (i32, i32) {
    %c0_i32 = arith.constant 0 : i32
    %c0_i32_0 = arith.constant 0 : i32
    %c0_i32_1 = arith.constant 0 : i32
    return %c0_i32, %c0_i32_0 : i32, i32
  }
  func.func @transform_3(%arg0: i32) -> (i32, i32) {
    %c0_i32 = arith.constant 0 : i32
    %c0_i32_0 = arith.constant 0 : i32
    return %arg0, %c0_i32 : i32, i32
  }
}

</mosaic_0001>

<llo_original>
// kernel: tpu_custom_call.1
$region0: #{tpu_custom_call.1}
  #allocation0 [shape = 'u32[]', space=smem, size = 0x4, offset = 0x4, fixed_abs, tag = 'smem constant byte address 0x4 - core index']
  #allocation1 [shape = 'u32[144,128]{1,0:T(1,128)}', space=vmem, size = 0x12000, scoped, tag = 'internal scratch']
  %s0 = inlined_call_operand.vmem [shape: f32[501,64], index: 0, kind: input, shape index: {}]
  %s1 = inlined_call_operand.vmem [shape: f32[64,128], index: 1, kind: input, shape index: {}]
  %s2 = inlined_call_operand.vmem [shape: f32[1,128], index: 2, kind: input, shape index: {}]
  %s3 = inlined_call_operand.hbm [shape: f32[501,128], index: 3, kind: output, shape index: {}]
  %s4 = sld [smem:[#allocation0]]
  $region22: #{tpu_custom_call.1} parent=0
    _
  %s6 = ssub.s32 1, %s4
  %s7 = scalar_select 0, %s6, %s4
  $region1: #{tpu_custom_call.1} parent=0
    #allocation2 [shape = 'u8[258048]{0}', space=vmem, size = 0x3f000, scoped, tag = 'output window, operand 0, single buffered']
    #allocation3 [shape = 's32[1]{0}', space=sflag, size = 0x4, scoped, tag = 'scoped memory for tpu_custom_call.1']
    %8 = vsyncpa [#allocation3], 0
    // Predicated region
    $region2: #{tpu_custom_call.1} parent=1 // pred_check
      _
    $region3: #{tpu_custom_call.1} parent=1 // pred_check_branch
      %10 = sbr.rel (0) target = $region5
    $region4: #{tpu_custom_call.1} parent=1 // pred_region
      _
    $region5: #{tpu_custom_call.1} parent=1 // pred_fallthru
      _
    // Predicated region
    $region6: #{tpu_custom_call.1} parent=1 // pred_check
      _
    $region7: #{tpu_custom_call.1} parent=1 // pred_check_branch
      %12 = sbr.rel (0) target = $region9
    $region8: #{tpu_custom_call.1} parent=1 // pred_region
      _
    $region9: #{tpu_custom_call.1} parent=1 // pred_fallthru
      _
    // Predicated region
    $region10: #{tpu_custom_call.1} parent=1 // pred_check
      _
    $region11: #{tpu_custom_call.1} parent=1 // pred_check_branch
      %14 = sbr.rel (0) target = $region13
    $region12: #{tpu_custom_call.1} parent=1 // pred_region
      _
    $region13: #{tpu_custom_call.1} parent=1 // pred_fallthru
      _
    %v15 = vld [vmem:[%s0] sm:$0xff]
    %v16 = vld [vmem:[%s0 + $0x8] sm:$0xff]
    %v17 = vld [vmem:[%s0 + $0x10] sm:$0xff]
    %v18 = vld [vmem:[%s0 + $0x18] sm:$0xff]
    %v19 = vld [vmem:[%s0 + $0x20] sm:$0xff]
    %v20 = vld [vmem:[%s0 + $0x28] sm:$0xff]
    %v21 = vld [vmem:[%s0 + $0x30] sm:$0xff]
    %v22 = vld [vmem:[%s0 + $0x38] sm:$0xff]
    %v23 = vld [vmem:[%s0 + $0x40] sm:$0xff]
    %v24 = vld [vmem:[%s0 + $0x48] sm:$0xff]
    %v25 = vld [vmem:[%s0 + $0x50] sm:$0xff]
    %v26 = vld [vmem:[%s0 + $0x58] sm:$0xff]
    %v27 = vld [vmem:[%s0 + $0x60] sm:$0xff]
    %v28 = vld [vmem:[%s0 + $0x68] sm:$0xff]
    %v29 = vld [vmem:[%s0 + $0x70] sm:$0xff]
    %v30 = vld [vmem:[%s0 + $0x78] sm:$0xff]
    %v31 = vld [vmem:[%s0 + $0x80] sm:$0xff]
    %v32 = vld [vmem:[%s0 + $0x88] sm:$0xff]
    %v33 = vld [vmem:[%s0 + $0x90] sm:$0xff]
    %v34 = vld [vmem:[%s0 + $0x98] sm:$0xff]
    %v35 = vld [vmem:[%s0 + $0xa0] sm:$0xff]
    %v36 = vld [vmem:[%s0 + $0xa8] sm:$0xff]
    %v37 = vld [vmem:[%s0 + $0xb0] sm:$0xff]
    %v38 = vld [vmem:[%s0 + $0xb8] sm:$0xff]
    %v39 = vld [vmem:[%s0 + $0xc0] sm:$0xff]
    %v40 = vld [vmem:[%s0 + $0xc8] sm:$0xff]
    %v41 = vld [vmem:[%s0 + $0xd0] sm:$0xff]
    %v42 = vld [vmem:[%s0 + $0xd8] sm:$0xff]
    %v43 = vld [vmem:[%s0 + $0xe0] sm:$0xff]
    %v44 = vld [vmem:[%s0 + $0xe8] sm:$0xff]
    %v45 = vld [vmem:[%s0 + $0xf0] sm:$0xff]
    %v46 = vld [vmem:[%s0 + $0xf8] sm:$0xff]
    %v47 = vld [vmem:[%s0 + $0x100] sm:$0xff]
    %v48 = vld [vmem:[%s0 + $0x108] sm:$0xff]
    %v49 = vld [vmem:[%s0 + $0x110] sm:$0xff]
    %v50 = vld [vmem:[%s0 + $0x118] sm:$0xff]
    %v51 = vld [vmem:[%s0 + $0x120] sm:$0xff]
    %v52 = vld [vmem:[%s0 + $0x128] sm:$0xff]
    %v53 = vld [vmem:[%s0 + $0x130] sm:$0xff]
    %v54 = vld [vmem:[%s0 + $0x138] sm:$0xff]
    %v55 = vld [vmem:[%s0 + $0x140] sm:$0xff]
    %v56 = vld [vmem:[%s0 + $0x148] sm:$0xff]
    %v57 = vld [vmem:[%s0 + $0x150] sm:$0xff]
    %v58 = vld [vmem:[%s0 + $0x158] sm:$0xff]
    %v59 = vld [vmem:[%s0 + $0x160] sm:$0xff]
    %v60 = vld [vmem:[%s0 + $0x168] sm:$0xff]
    %v61 = vld [vmem:[%s0 + $0x170] sm:$0xff]
    %v62 = vld [vmem:[%s0 + $0x178] sm:$0xff]
    %v63 = vld [vmem:[%s0 + $0x180] sm:$0xff]
    %v64 = vld [vmem:[%s0 + $0x188] sm:$0xff]
    %v65 = vld [vmem:[%s0 + $0x190] sm:$0xff]
    %v66 = vld [vmem:[%s0 + $0x198] sm:$0xff]
    %v67 = vld [vmem:[%s0 + $0x1a0] sm:$0xff]
    %v68 = vld [vmem:[%s0 + $0x1a8] sm:$0xff]
    %v69 = vld [vmem:[%s0 + $0x1b0] sm:$0xff]
    %v70 = vld [vmem:[%s0 + $0x1b8] sm:$0xff]
    %v71 = vld [vmem:[%s0 + $0x1c0] sm:$0xff]
    %v72 = vld [vmem:[%s0 + $0x1c8] sm:$0xff]
    %v73 = vld [vmem:[%s0 + $0x1d0] sm:$0xff]
    %v74 = vld [vmem:[%s0 + $0x1d8] sm:$0xff]
    %v75 = vld [vmem:[%s0 + $0x1e0] sm:$0xff]
    %v76 = vld [vmem:[%s0 + $0x1e8] sm:$0xff]
    %v77 = vld [vmem:[%s0 + $0x1f0] sm:$0xff]
    %v78 = vld [vmem:[%s1] sm:$0xff]
    %v79 = vld [vmem:[%s1 + $0x8] sm:$0xff]
    %v80 = vld [vmem:[%s1 + $0x10] sm:$0xff]
    %v81 = vld [vmem:[%s1 + $0x18] sm:$0xff]
    %v82 = vld [vmem:[%s1 + $0x20] sm:$0xff]
    %v83 = vld [vmem:[%s1 + $0x28] sm:$0xff]
    %v84 = vld [vmem:[%s1 + $0x30] sm:$0xff]
    %v85 = vld [vmem:[%s1 + $0x38] sm:$0xff]
    %v86 = vld [vmem:[%s2] sm:$0x1]
    %v88 = vlaneseq
    %v89 = vshrl.u32 %v88, 7
    %v90 = vsub.s32 0, %v89
    %v91 = vrot.slane %v86, %v90
    %vm93 = vcmask 523264
    %v95 = vsel %vm93, %v15, 0
    %v98 = vsel %vm93, %v16, 0
    %v101 = vsel %vm93, %v17, 0
    %v104 = vsel %vm93, %v18, 0
    %v107 = vsel %vm93, %v19, 0
    %v110 = vsel %vm93, %v20, 0
    %v113 = vsel %vm93, %v21, 0
    %v116 = vsel %vm93, %v22, 0
    %v119 = vsel %vm93, %v23, 0
    %v122 = vsel %vm93, %v24, 0
    %v125 = vsel %vm93, %v25, 0
    %v128 = vsel %vm93, %v26, 0
    %v131 = vsel %vm93, %v27, 0
    %v134 = vsel %vm93, %v28, 0
    %v137 = vsel %vm93, %v29, 0
    %v140 = vsel %vm93, %v30, 0
    %v143 = vsel %vm93, %v31, 0
    %v146 = vsel %vm93, %v32, 0
    %v149 = vsel %vm93, %v33, 0
    %v152 = vsel %vm93, %v34, 0
    %v155 = vsel %vm93, %v35, 0
    %v158 = vsel %vm93, %v36, 0
    %v161 = vsel %vm93, %v37, 0
    %v164 = vsel %vm93, %v38, 0
    %v167 = vsel %vm93, %v39, 0
    %v170 = vsel %vm93, %v40, 0
    %v173 = vsel %vm93, %v41, 0
    %v176 = vsel %vm93, %v42, 0
    %v179 = vsel %vm93, %v43, 0
    %v182 = vsel %vm93, %v44, 0
    %v185 = vsel %vm93, %v45, 0
    %v188 = vsel %vm93, %v46, 0
    %v191 = vsel %vm93, %v47, 0
    %v194 = vsel %vm93, %v48, 0
    %v197 = vsel %vm93, %v49, 0
    %v200 = vsel %vm93, %v50, 0
    %v203 = vsel %vm93, %v51, 0
    %v206 = vsel %vm93, %v52, 0
    %v209 = vsel %vm93, %v53, 0
    %v212 = vsel %vm93, %v54, 0
    %v215 = vsel %vm93, %v55, 0
    %v218 = vsel %vm93, %v56, 0
    %v221 = vsel %vm93, %v57, 0
    %v224 = vsel %vm93, %v58, 0
    %v227 = vsel %vm93, %v59, 0
    %v230 = vsel %vm93, %v60, 0
    %v233 = vsel %vm93, %v61, 0
    %v236 = vsel %vm93, %v62, 0
    %v239 = vsel %vm93, %v63, 0
    %v242 = vsel %vm93, %v64, 0
    %v245 = vsel %vm93, %v65, 0
    %v248 = vsel %vm93, %v66, 0
    %v251 = vsel %vm93, %v67, 0
    %v254 = vsel %vm93, %v68, 0
    %v257 = vsel %vm93, %v69, 0
    %v260 = vsel %vm93, %v70, 0
    %v263 = vsel %vm93, %v71, 0
    %v266 = vsel %vm93, %v72, 0
    %v269 = vsel %vm93, %v73, 0
    %v272 = vsel %vm93, %v74, 0
    %v275 = vsel %vm93, %v75, 0
    %v278 = vsel %vm93, %v76, 0
    %v281 = vsel %vm93, %v77, 0
    %283 = vmatprep.subr.mxu0 0.0
    %284 = vmatpush1.msra.mxu0 0.0
    %285 = vmatprep.subr.mxu0 0.0
    %286 = vmatpush1.msra.mxu0 0.0
    %287 = vmatprep.subr.mxu0 0.0
    %288 = vmatpush1.msra.mxu0 0.0
    %289 = vmatprep.subr.mxu0 0.0
    %290 = vmatpush1.msra.mxu0 0.0
    %291 = vmatprep.subr.mxu0 0.0
    %292 = vmatpush1.msra.mxu0 0.0
    %293 = vmatprep.subr.mxu0 0.0
    %294 = vmatpush1.msra.mxu0 0.0
    %295 = vmatprep.subr.mxu0 0.0
    %296 = vmatpush1.msra.mxu0 0.0
    %297 = vmatprep.subr.mxu0 0.0
    %298 = vmatpush1.msra.mxu0 0.0
    %299 = vmatprep.subr.mxu0 0.0
    %300 = vmatpush1.msra.mxu0 %v85
    %301 = vmatprep.subr.mxu0 0.0
    %302 = vmatpush1.msra.mxu0 %v84
    %303 = vmatprep.subr.mxu0 0.0
    %304 = vmatpush1.msra.mxu0 %v83
    %305 = vmatprep.subr.mxu0 0.0
    %306 = vmatpush1.msra.mxu0 %v82
    %307 = vmatprep.subr.mxu0 0.0
    %308 = vmatpush1.msra.mxu0 %v81
    %309 = vmatprep.subr.mxu0 0.0
    %310 = vmatpush1.msra.mxu0 %v80
    %311 = vmatprep.subr.mxu0 0.0
    %312 = vmatpush1.msra.mxu0 %v79
    %313 = vmatprep.subr.mxu0 0.0
    %314 = vmatpush1.msra.mxu0 %v78
    %315 = vmatprep.subr.mxu0 0.0
    %316 = vmatpush2.msra.mxu0 0.0
    %317 = vmatprep.subr.mxu0 0.0
    %318 = vmatpush2.msra.mxu0 0.0
    %319 = vmatprep.subr.mxu0 0.0
    %320 = vmatpush2.msra.mxu0 0.0
    %321 = vmatprep.subr.mxu0 0.0
    %322 = vmatpush2.msra.mxu0 0.0
    %323 = vmatprep.subr.mxu0 0.0
    %324 = vmatpush2.msra.mxu0 0.0
    %325 = vmatprep.subr.mxu0 0.0
    %326 = vmatpush2.msra.mxu0 0.0
    %327 = vmatprep.subr.mxu0 0.0
    %328 = vmatpush2.msra.mxu0 0.0
    %329 = vmatprep.subr.mxu0 0.0
    %330 = vmatpush2.msra.mxu0 0.0
    %331 = vmatprep.subr.mxu0 0.0
    %332 = vmatpush2.msra.mxu0 0.0
    %333 = vmatprep.subr.mxu0 0.0
    %334 = vmatpush2.msra.mxu0 0.0
    %335 = vmatprep.subr.mxu0 0.0
    %336 = vmatpush2.msra.mxu0 0.0
    %337 = vmatprep.subr.mxu0 0.0
    %338 = vmatpush2.msra.mxu0 0.0
    %339 = vmatprep.subr.mxu0 0.0
    %340 = vmatpush2.msra.mxu0 0.0
    %341 = vmatprep.subr.mxu0 0.0
    %342 = vmatpush2.msra.mxu0 0.0
    %343 = vmatprep.subr.mxu0 0.0
    %344 = vmatpush2.msra.mxu0 0.0
    %345 = vmatprep.subr.mxu0 0.0
    %346 = vmatpush2.msra.mxu0 0.0
    %347 = vmatprep.mubr.f32.mxu0 0.0
    %348 = vmatmul.mubr.f32.gmra.mxu0 %v95
    %v349 = vpop.f32.mrf.mxu0
    %v350 = vadd.f32 %v91, %v349
    %v351 = vpop.f32.mrf.mxu0
    %352 = vmatprep.mubr.f32.mxu0 0.0
    %353 = vmatmul.mubr.f32.gmra.mxu0 %v98
    %v354 = vpop.f32.mrf.mxu0
    %v355 = vadd.f32 %v91, %v354
    %v356 = vpop.f32.mrf.mxu0
    %357 = vmatprep.mubr.f32.mxu0 0.0
    %358 = vmatmul.mubr.f32.gmra.mxu0 %v101
    %v359 = vpop.f32.mrf.mxu0
    %v360 = vadd.f32 %v91, %v359
    %v361 = vpop.f32.mrf.mxu0
    %362 = vmatprep.mubr.f32.mxu0 0.0
    %363 = vmatmul.mubr.f32.gmra.mxu0 %v104
    %v364 = vpop.f32.mrf.mxu0
    %v365 = vadd.f32 %v91, %v364
    %v366 = vpop.f32.mrf.mxu0
    %367 = vmatprep.mubr.f32.mxu0 0.0
    %368 = vmatmul.mubr.f32.gmra.mxu0 %v107
    %v369 = vpop.f32.mrf.mxu0
    %v370 = vadd.f32 %v91, %v369
    %v371 = vpop.f32.mrf.mxu0
    %372 = vmatprep.mubr.f32.mxu0 0.0
    %373 = vmatmul.mubr.f32.gmra.mxu0 %v110
    %v374 = vpop.f32.mrf.mxu0
    %v375 = vadd.f32 %v91, %v374
    %v376 = vpop.f32.mrf.mxu0
    %377 = vmatprep.mubr.f32.mxu0 0.0
    %378 = vmatmul.mubr.f32.gmra.mxu0 %v113
    %v379 = vpop.f32.mrf.mxu0
    %v380 = vadd.f32 %v91, %v379
    %v381 = vpop.f32.mrf.mxu0
    %382 = vmatprep.mubr.f32.mxu0 0.0
    %383 = vmatmul.mubr.f32.gmra.mxu0 %v116
    %v384 = vpop.f32.mrf.mxu0
    %v385 = vadd.f32 %v91, %v384
    %v386 = vpop.f32.mrf.mxu0
    %387 = vmatprep.mubr.f32.mxu0 0.0
    %388 = vmatmul.mubr.f32.gmra.mxu0 %v119
    %v389 = vpop.f32.mrf.mxu0
    %v390 = vadd.f32 %v91, %v389
    %v391 = vpop.f32.mrf.mxu0
    %392 = vmatprep.mubr.f32.mxu0 0.0
    %393 = vmatmul.mubr.f32.gmra.mxu0 %v122
    %v394 = vpop.f32.mrf.mxu0
    %v395 = vadd.f32 %v91, %v394
    %v396 = vpop.f32.mrf.mxu0
    %397 = vmatprep.mubr.f32.mxu0 0.0
    %398 = vmatmul.mubr.f32.gmra.mxu0 %v125
    %v399 = vpop.f32.mrf.mxu0
    %v400 = vadd.f32 %v91, %v399
    %v401 = vpop.f32.mrf.mxu0
    %402 = vmatprep.mubr.f32.mxu0 0.0
    %403 = vmatmul.mubr.f32.gmra.mxu0 %v128
    %v404 = vpop.f32.mrf.mxu0
    %v405 = vadd.f32 %v91, %v404
    %v406 = vpop.f32.mrf.mxu0
    %407 = vmatprep.mubr.f32.mxu0 0.0
    %408 = vmatmul.mubr.f32.gmra.mxu0 %v131
    %v409 = vpop.f32.mrf.mxu0
    %v410 = vadd.f32 %v91, %v409
    %v411 = vpop.f32.mrf.mxu0
    %412 = vmatprep.mubr.f32.mxu0 0.0
    %413 = vmatmul.mubr.f32.gmra.mxu0 %v134
    %v414 = vpop.f32.mrf.mxu0
    %v415 = vadd.f32 %v91, %v414
    %v416 = vpop.f32.mrf.mxu0
    %417 = vmatprep.mubr.f32.mxu0 0.0
    %418 = vmatmul.mubr.f32.gmra.mxu0 %v137
    %v419 = vpop.f32.mrf.mxu0
    %v420 = vadd.f32 %v91, %v419
    %v421 = vpop.f32.mrf.mxu0
    %422 = vmatprep.mubr.f32.mxu0 0.0
    %423 = vmatmul.mubr.f32.gmra.mxu0 %v140
    %v424 = vpop.f32.mrf.mxu0
    %v425 = vadd.f32 %v91, %v424
    %v426 = vpop.f32.mrf.mxu0
    %427 = vmatprep.mubr.f32.mxu0 0.0
    %428 = vmatmul.mubr.f32.gmra.mxu0 %v143
    %v429 = vpop.f32.mrf.mxu0
    %v430 = vadd.f32 %v91, %v429
    %v431 = vpop.f32.mrf.mxu0
    %432 = vmatprep.mubr.f32.mxu0 0.0
    %433 = vmatmul.mubr.f32.gmra.mxu0 %v146
    %v434 = vpop.f32.mrf.mxu0
    %v435 = vadd.f32 %v91, %v434
    %v436 = vpop.f32.mrf.mxu0
    %437 = vmatprep.mubr.f32.mxu0 0.0
    %438 = vmatmul.mubr.f32.gmra.mxu0 %v149
    %v439 = vpop.f32.mrf.mxu0
    %v440 = vadd.f32 %v91, %v439
    %v441 = vpop.f32.mrf.mxu0
    %442 = vmatprep.mubr.f32.mxu0 0.0
    %443 = vmatmul.mubr.f32.gmra.mxu0 %v152
    %v444 = vpop.f32.mrf.mxu0
    %v445 = vadd.f32 %v91, %v444
    %v446 = vpop.f32.mrf.mxu0
    %447 = vmatprep.mubr.f32.mxu0 0.0
    %448 = vmatmul.mubr.f32.gmra.mxu0 %v155
    %v449 = vpop.f32.mrf.mxu0
    %v450 = vadd.f32 %v91, %v449
    %v451 = vpop.f32.mrf.mxu0
    %452 = vmatprep.mubr.f32.mxu0 0.0
    %453 = vmatmul.mubr.f32.gmra.mxu0 %v158
    %v454 = vpop.f32.mrf.mxu0
    %v455 = vadd.f32 %v91, %v454
    %v456 = vpop.f32.mrf.mxu0
    %457 = vmatprep.mubr.f32.mxu0 0.0
    %458 = vmatmul.mubr.f32.gmra.mxu0 %v161
    %v459 = vpop.f32.mrf.mxu0
    %v460 = vadd.f32 %v91, %v459
    %v461 = vpop.f32.mrf.mxu0
    %462 = vmatprep.mubr.f32.mxu0 0.0
    %463 = vmatmul.mubr.f32.gmra.mxu0 %v164
    %v464 = vpop.f32.mrf.mxu0
    %v465 = vadd.f32 %v91, %v464
    %v466 = vpop.f32.mrf.mxu0
    %467 = vmatprep.mubr.f32.mxu0 0.0
    %468 = vmatmul.mubr.f32.gmra.mxu0 %v167
    %v469 = vpop.f32.mrf.mxu0
    %v470 = vadd.f32 %v91, %v469
    %v471 = vpop.f32.mrf.mxu0
    %472 = vmatprep.mubr.f32.mxu0 0.0
    %473 = vmatmul.mubr.f32.gmra.mxu0 %v170
    %v474 = vpop.f32.mrf.mxu0
    %v475 = vadd.f32 %v91, %v474
    %v476 = vpop.f32.mrf.mxu0
    %477 = vmatprep.mubr.f32.mxu0 0.0
    %478 = vmatmul.mubr.f32.gmra.mxu0 %v173
    %v479 = vpop.f32.mrf.mxu0
    %v480 = vadd.f32 %v91, %v479
    %v481 = vpop.f32.mrf.mxu0
    %482 = vmatprep.mubr.f32.mxu0 0.0
    %483 = vmatmul.mubr.f32.gmra.mxu0 %v176
    %v484 = vpop.f32.mrf.mxu0
    %v485 = vadd.f32 %v91, %v484
    %v486 = vpop.f32.mrf.mxu0
    %487 = vmatprep.mubr.f32.mxu0 0.0
    %488 = vmatmul.mubr.f32.gmra.mxu0 %v179
    %v489 = vpop.f32.mrf.mxu0
    %v490 = vadd.f32 %v91, %v489
    %v491 = vpop.f32.mrf.mxu0
    %492 = vmatprep.mubr.f32.mxu0 0.0
    %493 = vmatmul.mubr.f32.gmra.mxu0 %v182
    %v494 = vpop.f32.mrf.mxu0
    %v495 = vadd.f32 %v91, %v494
    %v496 = vpop.f32.mrf.mxu0
    %497 = vmatprep.mubr.f32.mxu0 0.0
    %498 = vmatmul.mubr.f32.gmra.mxu0 %v185
    %v499 = vpop.f32.mrf.mxu0
    %v500 = vadd.f32 %v91, %v499
    %v501 = vpop.f32.mrf.mxu0
    %502 = vmatprep.mubr.f32.mxu0 0.0
    %503 = vmatmul.mubr.f32.gmra.mxu0 %v188
    %v504 = vpop.f32.mrf.mxu0
    %v505 = vadd.f32 %v91, %v504
    %v506 = vpop.f32.mrf.mxu0
    %507 = vmatprep.mubr.f32.mxu0 0.0
    %508 = vmatmul.mubr.f32.gmra.mxu0 %v191
    %v509 = vpop.f32.mrf.mxu0
    %v510 = vadd.f32 %v91, %v509
    %v511 = vpop.f32.mrf.mxu0
    %512 = vmatprep.mubr.f32.mxu0 0.0
    %513 = vmatmul.mubr.f32.gmra.mxu0 %v194
    %v514 = vpop.f32.mrf.mxu0
    %v515 = vadd.f32 %v91, %v514
    %v516 = vpop.f32.mrf.mxu0
    %517 = vmatprep.mubr.f32.mxu0 0.0
    %518 = vmatmul.mubr.f32.gmra.mxu0 %v197
    %v519 = vpop.f32.mrf.mxu0
    %v520 = vadd.f32 %v91, %v519
    %v521 = vpop.f32.mrf.mxu0
    %522 = vmatprep.mubr.f32.mxu0 0.0
    %523 = vmatmul.mubr.f32.gmra.mxu0 %v200
    %v524 = vpop.f32.mrf.mxu0
    %v525 = vadd.f32 %v91, %v524
    %v526 = vpop.f32.mrf.mxu0
    %527 = vmatprep.mubr.f32.mxu0 0.0
    %528 = vmatmul.mubr.f32.gmra.mxu0 %v203
    %v529 = vpop.f32.mrf.mxu0
    %v530 = vadd.f32 %v91, %v529
    %v531 = vpop.f32.mrf.mxu0
    %532 = vmatprep.mubr.f32.mxu0 0.0
    %533 = vmatmul.mubr.f32.gmra.mxu0 %v206
    %v534 = vpop.f32.mrf.mxu0
    %v535 = vadd.f32 %v91, %v534
    %v536 = vpop.f32.mrf.mxu0
    %537 = vmatprep.mubr.f32.mxu0 0.0
    %538 = vmatmul.mubr.f32.gmra.mxu0 %v209
    %v539 = vpop.f32.mrf.mxu0
    %v540 = vadd.f32 %v91, %v539
    %v541 = vpop.f32.mrf.mxu0
    %542 = vmatprep.mubr.f32.mxu0 0.0
    %543 = vmatmul.mubr.f32.gmra.mxu0 %v212
    %v544 = vpop.f32.mrf.mxu0
    %v545 = vadd.f32 %v91, %v544
    %v546 = vpop.f32.mrf.mxu0
    %547 = vmatprep.mubr.f32.mxu0 0.0
    %548 = vmatmul.mubr.f32.gmra.mxu0 %v215
    %v549 = vpop.f32.mrf.mxu0
    %v550 = vadd.f32 %v91, %v549
    %v551 = vpop.f32.mrf.mxu0
    %552 = vmatprep.mubr.f32.mxu0 0.0
    %553 = vmatmul.mubr.f32.gmra.mxu0 %v218
    %v554 = vpop.f32.mrf.mxu0
    %v555 = vadd.f32 %v91, %v554
    %v556 = vpop.f32.mrf.mxu0
    %557 = vmatprep.mubr.f32.mxu0 0.0
    %558 = vmatmul.mubr.f32.gmra.mxu0 %v221
    %v559 = vpop.f32.mrf.mxu0
    %v560 = vadd.f32 %v91, %v559
    %v561 = vpop.f32.mrf.mxu0
    %562 = vmatprep.mubr.f32.mxu0 0.0
    %563 = vmatmul.mubr.f32.gmra.mxu0 %v224
    %v564 = vpop.f32.mrf.mxu0
    %v565 = vadd.f32 %v91, %v564
    %v566 = vpop.f32.mrf.mxu0
    %567 = vmatprep.mubr.f32.mxu0 0.0
    %568 = vmatmul.mubr.f32.gmra.mxu0 %v227
    %v569 = vpop.f32.mrf.mxu0
    %v570 = vadd.f32 %v91, %v569
    %v571 = vpop.f32.mrf.mxu0
    %572 = vmatprep.mubr.f32.mxu0 0.0
    %573 = vmatmul.mubr.f32.gmra.mxu0 %v230
    %v574 = vpop.f32.mrf.mxu0
    %v575 = vadd.f32 %v91, %v574
    %v576 = vpop.f32.mrf.mxu0
    %577 = vmatprep.mubr.f32.mxu0 0.0
    %578 = vmatmul.mubr.f32.gmra.mxu0 %v233
    %v579 = vpop.f32.mrf.mxu0
    %v580 = vadd.f32 %v91, %v579
    %v581 = vpop.f32.mrf.mxu0
    %582 = vmatprep.mubr.f32.mxu0 0.0
    %583 = vmatmul.mubr.f32.gmra.mxu0 %v236
    %v584 = vpop.f32.mrf.mxu0
    %v585 = vadd.f32 %v91, %v584
    %v586 = vpop.f32.mrf.mxu0
    %587 = vmatprep.mubr.f32.mxu0 0.0
    %588 = vmatmul.mubr.f32.gmra.mxu0 %v239
    %v589 = vpop.f32.mrf.mxu0
    %v590 = vadd.f32 %v91, %v589
    %v591 = vpop.f32.mrf.mxu0
    %592 = vmatprep.mubr.f32.mxu0 0.0
    %593 = vmatmul.mubr.f32.gmra.mxu0 %v242
    %v594 = vpop.f32.mrf.mxu0
    %v595 = vadd.f32 %v91, %v594
    %v596 = vpop.f32.mrf.mxu0
    %597 = vmatprep.mubr.f32.mxu0 0.0
    %598 = vmatmul.mubr.f32.gmra.mxu0 %v245
    %v599 = vpop.f32.mrf.mxu0
    %v600 = vadd.f32 %v91, %v599
    %v601 = vpop.f32.mrf.mxu0
    %602 = vmatprep.mubr.f32.mxu0 0.0
    %603 = vmatmul.mubr.f32.gmra.mxu0 %v248
    %v604 = vpop.f32.mrf.mxu0
    %v605 = vadd.f32 %v91, %v604
    %v606 = vpop.f32.mrf.mxu0
    %607 = vmatprep.mubr.f32.mxu0 0.0
    %608 = vmatmul.mubr.f32.gmra.mxu0 %v251
    %v609 = vpop.f32.mrf.mxu0
    %v610 = vadd.f32 %v91, %v609
    %v611 = vpop.f32.mrf.mxu0
    %612 = vmatprep.mubr.f32.mxu0 0.0
    %613 = vmatmul.mubr.f32.gmra.mxu0 %v254
    %v614 = vpop.f32.mrf.mxu0
    %v615 = vadd.f32 %v91, %v614
    %v616 = vpop.f32.mrf.mxu0
    %617 = vmatprep.mubr.f32.mxu0 0.0
    %618 = vmatmul.mubr.f32.gmra.mxu0 %v257
    %v619 = vpop.f32.mrf.mxu0
    %v620 = vadd.f32 %v91, %v619
    %v621 = vpop.f32.mrf.mxu0
    %622 = vmatprep.mubr.f32.mxu0 0.0
    %623 = vmatmul.mubr.f32.gmra.mxu0 %v260
    %v624 = vpop.f32.mrf.mxu0
    %v625 = vadd.f32 %v91, %v624
    %v626 = vpop.f32.mrf.mxu0
    %627 = vmatprep.mubr.f32.mxu0 0.0
    %628 = vmatmul.mubr.f32.gmra.mxu0 %v263
    %v629 = vpop.f32.mrf.mxu0
    %v630 = vadd.f32 %v91, %v629
    %v631 = vpop.f32.mrf.mxu0
    %632 = vmatprep.mubr.f32.mxu0 0.0
    %633 = vmatmul.mubr.f32.gmra.mxu0 %v266
    %v634 = vpop.f32.mrf.mxu0
    %v635 = vadd.f32 %v91, %v634
    %v636 = vpop.f32.mrf.mxu0
    %637 = vmatprep.mubr.f32.mxu0 0.0
    %638 = vmatmul.mubr.f32.gmra.mxu0 %v269
    %v639 = vpop.f32.mrf.mxu0
    %v640 = vadd.f32 %v91, %v639
    %v641 = vpop.f32.mrf.mxu0
    %642 = vmatprep.mubr.f32.mxu0 0.0
    %643 = vmatmul.mubr.f32.gmra.mxu0 %v272
    %v644 = vpop.f32.mrf.mxu0
    %v645 = vadd.f32 %v91, %v644
    %v646 = vpop.f32.mrf.mxu0
    %647 = vmatprep.mubr.f32.mxu0 0.0
    %648 = vmatmul.mubr.f32.gmra.mxu0 %v275
    %v649 = vpop.f32.mrf.mxu0
    %v650 = vadd.f32 %v91, %v649
    %v651 = vpop.f32.mrf.mxu0
    %652 = vmatprep.mubr.f32.mxu0 0.0
    %653 = vmatmul.mubr.f32.gmra.mxu0 %v278
    %v654 = vpop.f32.mrf.mxu0
    %v655 = vadd.f32 %v91, %v654
    %v656 = vpop.f32.mrf.mxu0
    %657 = vmatprep.mubr.f32.mxu0 0.0
    %658 = vmatmul.mubr.f32.gmra.mxu0 %v281
    %v659 = vpop.f32.mrf.mxu0
    %v660 = vadd.f32 %v91, %v659
    %v661 = vpop.f32.mrf.mxu0
    %662 = vdwg.mxu0
    %663 = vst [vmem:[#allocation2] sm:$0xff] %v350
    %664 = vst [vmem:[#allocation2 + $0x8] sm:$0xff] %v355
    %665 = vst [vmem:[#allocation2 + $0x10] sm:$0xff] %v360
    %666 = vst [vmem:[#allocation2 + $0x18] sm:$0xff] %v365
    %667 = vst [vmem:[#allocation2 + $0x20] sm:$0xff] %v370
    %668 = vst [vmem:[#allocation2 + $0x28] sm:$0xff] %v375
    %669 = vst [vmem:[#allocation2 + $0x30] sm:$0xff] %v380
    %670 = vst [vmem:[#allocation2 + $0x38] sm:$0xff] %v385
    %671 = vst [vmem:[#allocation2 + $0x40] sm:$0xff] %v390
    %672 = vst [vmem:[#allocation2 + $0x48] sm:$0xff] %v395
    %673 = vst [vmem:[#allocation2 + $0x50] sm:$0xff] %v400
    %674 = vst [vmem:[#allocation2 + $0x58] sm:$0xff] %v405
    %675 = vst [vmem:[#allocation2 + $0x60] sm:$0xff] %v410
    %676 = vst [vmem:[#allocation2 + $0x68] sm:$0xff] %v415
    %677 = vst [vmem:[#allocation2 + $0x70] sm:$0xff] %v420
    %678 = vst [vmem:[#allocation2 + $0x78] sm:$0xff] %v425
    %679 = vst [vmem:[#allocation2 + $0x80] sm:$0xff] %v430
    %680 = vst [vmem:[#allocation2 + $0x88] sm:$0xff] %v435
    %681 = vst [vmem:[#allocation2 + $0x90] sm:$0xff] %v440
    %682 = vst [vmem:[#allocation2 + $0x98] sm:$0xff] %v445
    %683 = vst [vmem:[#allocation2 + $0xa0] sm:$0xff] %v450
    %684 = vst [vmem:[#allocation2 + $0xa8] sm:$0xff] %v455
    %685 = vst [vmem:[#allocation2 + $0xb0] sm:$0xff] %v460
    %686 = vst [vmem:[#allocation2 + $0xb8] sm:$0xff] %v465
    %687 = vst [vmem:[#allocation2 + $0xc0] sm:$0xff] %v470
    %688 = vst [vmem:[#allocation2 + $0xc8] sm:$0xff] %v475
    %689 = vst [vmem:[#allocation2 + $0xd0] sm:$0xff] %v480
    %690 = vst [vmem:[#allocation2 + $0xd8] sm:$0xff] %v485
    %691 = vst [vmem:[#allocation2 + $0xe0] sm:$0xff] %v490
    %692 = vst [vmem:[#allocation2 + $0xe8] sm:$0xff] %v495
    %693 = vst [vmem:[#allocation2 + $0xf0] sm:$0xff] %v500
    %694 = vst [vmem:[#allocation2 + $0xf8] sm:$0xff] %v505
    %695 = vst [vmem:[#allocation2 + $0x100] sm:$0xff] %v510
    %696 = vst [vmem:[#allocation2 + $0x108] sm:$0xff] %v515
    %697 = vst [vmem:[#allocation2 + $0x110] sm:$0xff] %v520
    %698 = vst [vmem:[#allocation2 + $0x118] sm:$0xff] %v525
    %699 = vst [vmem:[#allocation2 + $0x120] sm:$0xff] %v530
    %700 = vst [vmem:[#allocation2 + $0x128] sm:$0xff] %v535
    %701 = vst [vmem:[#allocation2 + $0x130] sm:$0xff] %v540
    %702 = vst [vmem:[#allocation2 + $0x138] sm:$0xff] %v545
    %703 = vst [vmem:[#allocation2 + $0x140] sm:$0xff] %v550
    %704 = vst [vmem:[#allocation2 + $0x148] sm:$0xff] %v555
    %705 = vst [vmem:[#allocation2 + $0x150] sm:$0xff] %v560
    %706 = vst [vmem:[#allocation2 + $0x158] sm:$0xff] %v565
    %707 = vst [vmem:[#allocation2 + $0x160] sm:$0xff] %v570
    %708 = vst [vmem:[#allocation2 + $0x168] sm:$0xff] %v575
    %709 = vst [vmem:[#allocation2 + $0x170] sm:$0xff] %v580
    %710 = vst [vmem:[#allocation2 + $0x178] sm:$0xff] %v585
    %711 = vst [vmem:[#allocation2 + $0x180] sm:$0xff] %v590
    %712 = vst [vmem:[#allocation2 + $0x188] sm:$0xff] %v595
    %713 = vst [vmem:[#allocation2 + $0x190] sm:$0xff] %v600
    %714 = vst [vmem:[#allocation2 + $0x198] sm:$0xff] %v605
    %715 = vst [vmem:[#allocation2 + $0x1a0] sm:$0xff] %v610
    %716 = vst [vmem:[#allocation2 + $0x1a8] sm:$0xff] %v615
    %717 = vst [vmem:[#allocation2 + $0x1b0] sm:$0xff] %v620
    %718 = vst [vmem:[#allocation2 + $0x1b8] sm:$0xff] %v625
    %719 = vst [vmem:[#allocation2 + $0x1c0] sm:$0xff] %v630
    %720 = vst [vmem:[#allocation2 + $0x1c8] sm:$0xff] %v635
    %721 = vst [vmem:[#allocation2 + $0x1d0] sm:$0xff] %v640
    %722 = vst [vmem:[#allocation2 + $0x1d8] sm:$0xff] %v645
    %723 = vst [vmem:[#allocation2 + $0x1e0] sm:$0xff] %v650
    %724 = vst [vmem:[#allocation2 + $0x1e8] sm:$0xff] %v655
    %725 = vst [vmem:[#allocation2 + $0x1f0] sm:$0xff] %v660
    // Predicated region
    $region14: #{tpu_custom_call.1} parent=1 // pred_check
      _
    $region15: #{tpu_custom_call.1} parent=1 // pred_check_branch
      %727 = sbr.rel (0) target = $region17
    $region16: #{tpu_custom_call.1} parent=1 // pred_region
      %s729 = ssub.s32 8064, 8064
      %730 = vsyncadd [#allocation3], %s729
      %s731 = sshll.u32 [#allocation2], 4
      %s732 = int_to_ptr.vmem [resolvable:$true] %s731
      %737 = dma.vmem_to_hbm [thread:$0]  %s732, 8064, %s3, [#allocation3], 128, 128, 8
    $region17: #{tpu_custom_call.1} parent=1 // pred_fallthru
      _
    // Predicated region
    $region18: #{tpu_custom_call.1} parent=1 // pred_check
      _
    $region19: #{tpu_custom_call.1} parent=1 // pred_check_branch
      %739 = sbr.rel (0) target = $region21
    $region20: #{tpu_custom_call.1} parent=1 // pred_region
      %740 = dma.done [#allocation3], 8064
    $region21: #{tpu_custom_call.1} parent=1 // pred_fallthru
      _
    %741 = vsyncpa [#allocation3], 1

</llo_original>
